<compile_context>
chip_gen: v7x
topology: tpu7x:2x2x1
jax: 0.10.0
libtpu: 0.0.40
codegen_flags: <defaults>
</compile_context>

<pallas_src>
import functools

import jax
import jax.numpy as jnp
from jax.experimental import pallas as pl
from jax.experimental.pallas import tpu as pltpu

IN_F, HID_F, OUT_F = 3, 4, 1

# Offsets inside the single packed SMEM parameter vector.
W1_OFF = 0                       # 12 values, row-major (out=4, in=3) -- PyTorch layout
B1_OFF = W1_OFF + HID_F * IN_F   # 12
W2_OFF = B1_OFF + HID_F          # 16
B2_OFF = W2_OFF + HID_F          # 20
N_PARAMS = B2_OFF + OUT_F        # 21


def _round_up(a, b):
    return (a + b - 1) // b * b


def simple_nn_kernel(p_ref, x_ref, o_ref):
    # p_ref: (21,)            f32 SMEM  -- packed fc1/fc2 parameters
    # x_ref: (3, TB1, LANES)  VMEM      -- batch tile, io dtype (bf16 or f32)
    # o_ref: (TB1, LANES)     VMEM      -- lane- AND sublane-dense output tile
    xs = [x_ref[k].astype(jnp.float32) for k in range(IN_F)]    # three (TB1, LANES) slabs

    # fc1 + ReLU + fc2, fully unrolled as VPU FMAs driven by SMEM scalar broadcasts.
    y = None
    for j in range(HID_F):
        h = xs[0] * p_ref[W1_OFF + j * IN_F + 0]
        for k in range(1, IN_F):
            h = h + xs[k] * p_ref[W1_OFF + j * IN_F + k]
        h = jnp.maximum(h + p_ref[B1_OFF + j], 0.0)             # ReLU
        t = h * p_ref[W2_OFF + j]
        y = t if y is None else y + t
    y = y + p_ref[B2_OFF]                                       # (TB1, LANES) f32

    # sigmoid(y) = 0.5 * (tanh(y/2) + 1): one EUP op per vreg.
    o_ref[...] = (0.5 * (jnp.tanh(0.5 * y) + 1.0)).astype(o_ref.dtype)


@functools.partial(jax.jit, static_argnames=("io_dtype", "tile_rows", "lane_width"))
def simple_nn_forward(x, w1, b1, w2, b2, *, io_dtype=jnp.bfloat16,
                      tile_rows=512, lane_width=1024):
    """x: (B, 3). Params in PyTorch layout: w1 (4,3), b1 (4,), w2 (1,4), b2 (1,).
    Returns (B, 1) float32."""
    B = x.shape[0]
    assert x.shape[1] == IN_F
    assert lane_width % 128 == 0 and tile_rows % 16 == 0

    # ---- choose the 2-D (sublane-rows, lanes) batch layout -------------------------
    b128 = _round_up(B, 128)
    # Prefer filling >=16 sublane rows with real data before widening the lane dim.
    lanes = max(128, min(lane_width, (b128 // 16) // 128 * 128))
    rows = pl.cdiv(B, lanes)                       # sublane rows of useful data
    tb1 = min(tile_rows, _round_up(rows, 16))      # rows per block (mult of 16)
    rows_pad = _round_up(rows, tb1)
    nb = rows_pad // tb1
    if nb == 1 and tb1 % 32 == 0:                  # give v7x's 2 TensorCores >=2 blocks
        tb1 //= 2
        nb = 2
    bp = rows_pad * lanes                          # padded sample count

    # ---- relayout: (B,3) -> (3, rows_pad, lanes), io dtype (fused under this jit) ---
    xt = x.astype(io_dtype)
    if bp != B:
        xt = jnp.pad(xt, ((0, bp - B), (0, 0)))
    xt = xt.reshape(rows_pad, lanes, IN_F).transpose(2, 0, 1)    # (3, rows_pad, lanes)

    # ---- all 21 parameters packed into one SMEM vector ------------------------------
    params = jnp.concatenate([
        jnp.asarray(w1, jnp.float32).reshape(-1),   # 12
        jnp.asarray(b1, jnp.float32).reshape(-1),   # 4
        jnp.asarray(w2, jnp.float32).reshape(-1),   # 4
        jnp.asarray(b2, jnp.float32).reshape(-1),   # 1
    ])
    assert params.shape == (N_PARAMS,)

    out = pl.pallas_call(
        simple_nn_kernel,
        out_shape=jax.ShapeDtypeStruct((rows_pad, lanes), io_dtype),
        grid=(nb,),
        in_specs=[
            pl.BlockSpec(memory_space=pltpu.MemorySpace.SMEM),       # packed params
            pl.BlockSpec((IN_F, tb1, lanes), lambda i: (0, i, 0)),   # (3, TB1, lanes)
        ],
        out_specs=pl.BlockSpec((tb1, lanes), lambda i: (i, 0)),      # dense (TB1, lanes)
        compiler_params=pltpu.CompilerParams(
            dimension_semantics=("parallel",),       # shards blocks across TCs on v7x
            vmem_limit_bytes=48 << 20,               # safe on v5e/v6e/v7x; >> actual use
        ),
    )(params, xt)

    return out.reshape(-1)[:B].reshape(B, OUT_F).astype(jnp.float32)


def init_params(key):
    """PyTorch Linear-style init (uniform +/- 1/sqrt(fan_in)), (out, in) layout."""
    k1, k2, k3, k4 = jax.random.split(key, 4)
    bound1 = 1.0 / jnp.sqrt(3.0)   # fc1 fan_in = 3
    bound2 = 1.0 / jnp.sqrt(4.0)   # fc2 fan_in = 4
    w1 = jax.random.uniform(k1, (HID_F, IN_F), jnp.float32, -bound1, bound1)
    b1 = jax.random.uniform(k2, (HID_F,), jnp.float32, -bound1, bound1)
    w2 = jax.random.uniform(k3, (OUT_F, HID_F), jnp.float32, -bound2, bound2)
    b2 = jax.random.uniform(k4, (OUT_F,), jnp.float32, -bound2, bound2)
    return w1, b1, w2, b2


if __name__ == "__main__":
    key = jax.random.PRNGKey(0)
    kx, kp = jax.random.split(key)

    B = 1000   # not lane-aligned on purpose -> exercises the padding path
    x = jax.random.normal(kx, (B, IN_F), jnp.float32)
    w1, b1, w2, b2 = init_params(kp)

    # f32 HBM-I/O path (tight numerical check).
    out_f32 = jax.block_until_ready(
        simple_nn_forward(x, w1, b1, w2, b2, io_dtype=jnp.float32))
    # bf16 HBM-I/O path (perf default: halves bytes/sample on a mem-bound kernel).
    out_bf16 = jax.block_until_ready(simple_nn_forward(x, w1, b1, w2, b2))

    # Reference in plain JAX (same math as the PyTorch forward).
    h_ref = jnp.maximum(x @ w1.T + b1, 0.0)
    y_ref = jax.nn.sigmoid(h_ref @ w2.T + b2)   # (B, 1)

    assert out_f32.shape == (B, OUT_F) and out_bf16.shape == (B, OUT_F)
    assert jnp.allclose(out_f32, y_ref, atol=1e-5), "f32-I/O path mismatch vs reference"
    assert jnp.allclose(out_bf16, y_ref, atol=2e-2), "bf16-I/O path mismatch vs reference"

    print("KERNEL_OK")
</pallas_src>

<mosaic_0001>
module attributes {stable_mosaic.version = 11 : i64} {
  func.func @simple_nn_kernel(%arg0: i32, %arg1: memref<21xf32, #tpu.memory_space<smem>>, %arg2: memref<3x16x128xf32, #tpu.memory_space<vmem>>, %arg3: memref<16x128xf32, #tpu.memory_space<vmem>>) attributes {dimension_semantics = [#tpu.dimension_semantics<parallel>], iteration_bounds = array<i64: 1>, scalar_prefetch = 0 : i64, scratch_operands = 0 : i64, tpu.core_type = #tpu.core_type<tc>, window_params = [{transform_indices = @transform_0, window_bounds = array<i64: 21>}, {transform_indices = @transform_1, window_bounds = array<i64: 3, 16, 128>}, {transform_indices = @transform_2, window_bounds = array<i64: 16, 128>}]} {
    %c0 = arith.constant 0 : index
    %c0_0 = arith.constant 0 : index
    %c0_1 = arith.constant 0 : index
    %0 = vector.load %arg2[%c0, %c0_0, %c0_1] : memref<3x16x128xf32, #tpu.memory_space<vmem>>, vector<1x16x128xf32>
    %1 = vector.shape_cast %0 : vector<1x16x128xf32> to vector<16x128xf32>
    %c1 = arith.constant 1 : index
    %c0_2 = arith.constant 0 : index
    %c0_3 = arith.constant 0 : index
    %2 = vector.load %arg2[%c1, %c0_2, %c0_3] : memref<3x16x128xf32, #tpu.memory_space<vmem>>, vector<1x16x128xf32>
    %3 = vector.shape_cast %2 : vector<1x16x128xf32> to vector<16x128xf32>
    %c2 = arith.constant 2 : index
    %c0_4 = arith.constant 0 : index
    %c0_5 = arith.constant 0 : index
    %4 = vector.load %arg2[%c2, %c0_4, %c0_5] : memref<3x16x128xf32, #tpu.memory_space<vmem>>, vector<1x16x128xf32>
    %5 = vector.shape_cast %4 : vector<1x16x128xf32> to vector<16x128xf32>
    %c0_6 = arith.constant 0 : index
    %6 = memref.load %arg1[%c0_6] : memref<21xf32, #tpu.memory_space<smem>>
    %7 = vector.broadcast %6 : f32 to vector<16x128xf32>
    %8 = arith.mulf %1, %7 : vector<16x128xf32>
    %c1_7 = arith.constant 1 : index
    %9 = memref.load %arg1[%c1_7] : memref<21xf32, #tpu.memory_space<smem>>
    %10 = vector.broadcast %9 : f32 to vector<16x128xf32>
    %11 = arith.mulf %3, %10 : vector<16x128xf32>
    %12 = arith.addf %8, %11 : vector<16x128xf32>
    %c2_8 = arith.constant 2 : index
    %13 = memref.load %arg1[%c2_8] : memref<21xf32, #tpu.memory_space<smem>>
    %14 = vector.broadcast %13 : f32 to vector<16x128xf32>
    %15 = arith.mulf %5, %14 : vector<16x128xf32>
    %16 = arith.addf %12, %15 : vector<16x128xf32>
    %c12 = arith.constant 12 : index
    %17 = memref.load %arg1[%c12] : memref<21xf32, #tpu.memory_space<smem>>
    %18 = vector.broadcast %17 : f32 to vector<16x128xf32>
    %19 = arith.addf %16, %18 : vector<16x128xf32>
    %cst = arith.constant 0.000000e+00 : f32
    %20 = vector.broadcast %cst : f32 to vector<16x128xf32>
    %21 = arith.maximumf %19, %20 : vector<16x128xf32>
    %c16 = arith.constant 16 : index
    %22 = memref.load %arg1[%c16] : memref<21xf32, #tpu.memory_space<smem>>
    %23 = vector.broadcast %22 : f32 to vector<16x128xf32>
    %24 = arith.mulf %21, %23 : vector<16x128xf32>
    %c3 = arith.constant 3 : index
    %25 = memref.load %arg1[%c3] : memref<21xf32, #tpu.memory_space<smem>>
    %26 = vector.broadcast %25 : f32 to vector<16x128xf32>
    %27 = arith.mulf %1, %26 : vector<16x128xf32>
    %c4 = arith.constant 4 : index
    %28 = memref.load %arg1[%c4] : memref<21xf32, #tpu.memory_space<smem>>
    %29 = vector.broadcast %28 : f32 to vector<16x128xf32>
    %30 = arith.mulf %3, %29 : vector<16x128xf32>
    %31 = arith.addf %27, %30 : vector<16x128xf32>
    %c5 = arith.constant 5 : index
    %32 = memref.load %arg1[%c5] : memref<21xf32, #tpu.memory_space<smem>>
    %33 = vector.broadcast %32 : f32 to vector<16x128xf32>
    %34 = arith.mulf %5, %33 : vector<16x128xf32>
    %35 = arith.addf %31, %34 : vector<16x128xf32>
    %c13 = arith.constant 13 : index
    %36 = memref.load %arg1[%c13] : memref<21xf32, #tpu.memory_space<smem>>
    %37 = vector.broadcast %36 : f32 to vector<16x128xf32>
    %38 = arith.addf %35, %37 : vector<16x128xf32>
    %cst_9 = arith.constant 0.000000e+00 : f32
    %39 = vector.broadcast %cst_9 : f32 to vector<16x128xf32>
    %40 = arith.maximumf %38, %39 : vector<16x128xf32>
    %c17 = arith.constant 17 : index
    %41 = memref.load %arg1[%c17] : memref<21xf32, #tpu.memory_space<smem>>
    %42 = vector.broadcast %41 : f32 to vector<16x128xf32>
    %43 = arith.mulf %40, %42 : vector<16x128xf32>
    %44 = arith.addf %24, %43 : vector<16x128xf32>
    %c6 = arith.constant 6 : index
    %45 = memref.load %arg1[%c6] : memref<21xf32, #tpu.memory_space<smem>>
    %46 = vector.broadcast %45 : f32 to vector<16x128xf32>
    %47 = arith.mulf %1, %46 : vector<16x128xf32>
    %c7 = arith.constant 7 : index
    %48 = memref.load %arg1[%c7] : memref<21xf32, #tpu.memory_space<smem>>
    %49 = vector.broadcast %48 : f32 to vector<16x128xf32>
    %50 = arith.mulf %3, %49 : vector<16x128xf32>
    %51 = arith.addf %47, %50 : vector<16x128xf32>
    %c8 = arith.constant 8 : index
    %52 = memref.load %arg1[%c8] : memref<21xf32, #tpu.memory_space<smem>>
    %53 = vector.broadcast %52 : f32 to vector<16x128xf32>
    %54 = arith.mulf %5, %53 : vector<16x128xf32>
    %55 = arith.addf %51, %54 : vector<16x128xf32>
    %c14 = arith.constant 14 : index
    %56 = memref.load %arg1[%c14] : memref<21xf32, #tpu.memory_space<smem>>
    %57 = vector.broadcast %56 : f32 to vector<16x128xf32>
    %58 = arith.addf %55, %57 : vector<16x128xf32>
    %cst_10 = arith.constant 0.000000e+00 : f32
    %59 = vector.broadcast %cst_10 : f32 to vector<16x128xf32>
    %60 = arith.maximumf %58, %59 : vector<16x128xf32>
    %c18 = arith.constant 18 : index
    %61 = memref.load %arg1[%c18] : memref<21xf32, #tpu.memory_space<smem>>
    %62 = vector.broadcast %61 : f32 to vector<16x128xf32>
    %63 = arith.mulf %60, %62 : vector<16x128xf32>
    %64 = arith.addf %44, %63 : vector<16x128xf32>
    %c9 = arith.constant 9 : index
    %65 = memref.load %arg1[%c9] : memref<21xf32, #tpu.memory_space<smem>>
    %66 = vector.broadcast %65 : f32 to vector<16x128xf32>
    %67 = arith.mulf %1, %66 : vector<16x128xf32>
    %c10 = arith.constant 10 : index
    %68 = memref.load %arg1[%c10] : memref<21xf32, #tpu.memory_space<smem>>
    %69 = vector.broadcast %68 : f32 to vector<16x128xf32>
    %70 = arith.mulf %3, %69 : vector<16x128xf32>
    %71 = arith.addf %67, %70 : vector<16x128xf32>
    %c11 = arith.constant 11 : index
    %72 = memref.load %arg1[%c11] : memref<21xf32, #tpu.memory_space<smem>>
    %73 = vector.broadcast %72 : f32 to vector<16x128xf32>
    %74 = arith.mulf %5, %73 : vector<16x128xf32>
    %75 = arith.addf %71, %74 : vector<16x128xf32>
    %c15 = arith.constant 15 : index
    %76 = memref.load %arg1[%c15] : memref<21xf32, #tpu.memory_space<smem>>
    %77 = vector.broadcast %76 : f32 to vector<16x128xf32>
    %78 = arith.addf %75, %77 : vector<16x128xf32>
    %cst_11 = arith.constant 0.000000e+00 : f32
    %79 = vector.broadcast %cst_11 : f32 to vector<16x128xf32>
    %80 = arith.maximumf %78, %79 : vector<16x128xf32>
    %c19 = arith.constant 19 : index
    %81 = memref.load %arg1[%c19] : memref<21xf32, #tpu.memory_space<smem>>
    %82 = vector.broadcast %81 : f32 to vector<16x128xf32>
    %83 = arith.mulf %80, %82 : vector<16x128xf32>
    %84 = arith.addf %64, %83 : vector<16x128xf32>
    %c20 = arith.constant 20 : index
    %85 = memref.load %arg1[%c20] : memref<21xf32, #tpu.memory_space<smem>>
    %86 = vector.broadcast %85 : f32 to vector<16x128xf32>
    %87 = arith.addf %84, %86 : vector<16x128xf32>
    %cst_12 = arith.constant 5.000000e-01 : f32
    %88 = vector.broadcast %cst_12 : f32 to vector<16x128xf32>
    %89 = arith.mulf %88, %87 : vector<16x128xf32>
    %90 = math.tanh %89 : vector<16x128xf32>
    %cst_13 = arith.constant 1.000000e+00 : f32
    %91 = vector.broadcast %cst_13 : f32 to vector<16x128xf32>
    %92 = arith.addf %90, %91 : vector<16x128xf32>
    %cst_14 = arith.constant 5.000000e-01 : f32
    %93 = vector.broadcast %cst_14 : f32 to vector<16x128xf32>
    %94 = arith.mulf %93, %92 : vector<16x128xf32>
    %c0_15 = arith.constant 0 : index
    %c0_16 = arith.constant 0 : index
    %95 = vector.load %arg3[%c0_15, %c0_16] : memref<16x128xf32, #tpu.memory_space<vmem>>, vector<16x128xf32>
    tpu.vector_store %arg3[%c0_15, %c0_16], %94 {strides = array<i32>} : memref<16x128xf32, #tpu.memory_space<vmem>>, vector<16x128xf32>,
    return
  }
  func.func @transform_0(%arg0: i32) -> i32 {
    %c0_i32 = arith.constant 0 : i32
    %c0_i32_0 = arith.constant 0 : i32
    return %c0_i32 : i32
  }
  func.func @transform_1(%arg0: i32) -> (i32, i32, i32) {
    %c0_i32 = arith.constant 0 : i32
    %c0_i32_0 = arith.constant 0 : i32
    %c0_i32_1 = arith.constant 0 : i32
    return %c0_i32, %arg0, %c0_i32_0 : i32, i32, i32
  }
  func.func @transform_2(%arg0: i32) -> (i32, i32) {
    %c0_i32 = arith.constant 0 : i32
    %c0_i32_0 = arith.constant 0 : i32
    return %arg0, %c0_i32 : i32, i32
  }
}

</mosaic_0001>

<llo_original>
// kernel: simple_nn_forward.1
$region0: #{simple_nn_forward.1}
  #allocation0 [shape = 'u32[]', space=smem, size = 0x4, offset = 0x4, fixed_abs, tag = 'smem constant byte address 0x4 - core index']
  #allocation1 [shape = 'u32[144,128]{1,0:T(1,128)}', space=vmem, size = 0x12000, scoped, tag = 'internal scratch']
  %s0 = inlined_call_operand.vmem [shape: f32[21], index: 0, kind: input, shape index: {}]
  %s1 = inlined_call_operand.vmem [shape: f32[3,16,128], index: 1, kind: input, shape index: {}]
  %s2 = inlined_call_operand.vmem [shape: f32[16,128], index: 2, kind: output, shape index: {}]
  %s3 = sld [smem:[#allocation0]]
  $region22: #{simple_nn_forward.1} parent=0
    _
  %s5 = ssub.s32 1, %s3
  %s6 = scalar_select 0, %s5, %s3
  $region1: #{simple_nn_forward.1} parent=0
    #allocation2 [shape = 'u8[512]{0}', space=smem, size = 0x200, scoped, tag = 'input window, operand 0, single buffered']
    #allocation3 [shape = 's32[1]{0}', space=sflag, size = 0x4, scoped, tag = 'scoped memory for simple_nn_forward.1']
    %7 = vsyncpa [#allocation3], 0
    // Predicated region
    $region2: #{simple_nn_forward.1} parent=1 // pred_check
      _
    $region3: #{simple_nn_forward.1} parent=1 // pred_check_branch
      %9 = sbr.rel (0) target = $region5
    $region4: #{simple_nn_forward.1} parent=1 // pred_region
      %s11 = ssub.s32 16, 16
      %12 = vsyncadd [#allocation3], %s11
      %s14 = sshll.u32 %s0, 4
      %s15 = int_to_ptr.vmem [resolvable:$true] %s14
      %17 = dma.vmem_to_smem %s15, 16, [#allocation2], [#allocation3]
    $region5: #{simple_nn_forward.1} parent=1 // pred_fallthru
      _
    // Predicated region
    $region6: #{simple_nn_forward.1} parent=1 // pred_check
      _
    $region7: #{simple_nn_forward.1} parent=1 // pred_check_branch
      %19 = sbr.rel (0) target = $region9
    $region8: #{simple_nn_forward.1} parent=1 // pred_region
      _
    $region9: #{simple_nn_forward.1} parent=1 // pred_fallthru
      _
    // Predicated region
    $region10: #{simple_nn_forward.1} parent=1 // pred_check
      _
    $region11: #{simple_nn_forward.1} parent=1 // pred_check_branch
      %21 = sbr.rel (0) target = $region13
    $region12: #{simple_nn_forward.1} parent=1 // pred_region
      %22 = dma.done [#allocation3], 16
    $region13: #{simple_nn_forward.1} parent=1 // pred_fallthru
      _
    %23 = sfence
    %v24 = vld [vmem:[%s1] sm:$0xff]
    %v25 = vld [vmem:[%s1 + $0x8] sm:$0xff]
    %s26 = scalar_lea.vmem %s1, 16
    %v27 = vld [vmem:[%s26] sm:$0xff]
    %v28 = vld [vmem:[%s26 + $0x8] sm:$0xff]
    %s29 = scalar_lea.vmem %s1, 32
    %v30 = vld [vmem:[%s29] sm:$0xff]
    %v31 = vld [vmem:[%s29 + $0x8] sm:$0xff]
    %s32 = sld [smem:[#allocation2]]
    %v33 = vstv %s32
    %v34 = vmul.f32 %v24, %v33
    %v35 = vmul.f32 %v25, %v33
    %s36 = sld [smem:[#allocation2 + $0x1]]
    %v37 = vstv %s36
    %v38 = vmul.f32 %v27, %v37
    %v39 = vmul.f32 %v28, %v37
    %v40 = vadd.f32 %v34, %v38
    %v41 = vadd.f32 %v35, %v39
    %s42 = sld [smem:[#allocation2 + $0x2]]
    %v43 = vstv %s42
    %v44 = vmul.f32 %v30, %v43
    %v45 = vmul.f32 %v31, %v43
    %v46 = vadd.f32 %v40, %v44
    %v47 = vadd.f32 %v41, %v45
    %s48 = sld [smem:[#allocation2 + $0xc]]
    %v49 = vstv %s48
    %v50 = vadd.f32 %v46, %v49
    %v51 = vadd.f32 %v47, %v49
    %v52 = vmax.f32 %v50, 0.0
    %v53 = vmax.f32 %v51, 0.0
    %s54 = sld [smem:[#allocation2 + $0x10]]
    %v55 = vstv %s54
    %v56 = vmul.f32 %v52, %v55
    %v57 = vmul.f32 %v53, %v55
    %s58 = sld [smem:[#allocation2 + $0x3]]
    %v59 = vstv %s58
    %v60 = vmul.f32 %v24, %v59
    %v61 = vmul.f32 %v25, %v59
    %s62 = sld [smem:[#allocation2 + $0x4]]
    %v63 = vstv %s62
    %v64 = vmul.f32 %v27, %v63
    %v65 = vmul.f32 %v28, %v63
    %v66 = vadd.f32 %v60, %v64
    %v67 = vadd.f32 %v61, %v65
    %s68 = sld [smem:[#allocation2 + $0x5]]
    %v69 = vstv %s68
    %v70 = vmul.f32 %v30, %v69
    %v71 = vmul.f32 %v31, %v69
    %v72 = vadd.f32 %v66, %v70
    %v73 = vadd.f32 %v67, %v71
    %s74 = sld [smem:[#allocation2 + $0xd]]
    %v75 = vstv %s74
    %v76 = vadd.f32 %v72, %v75
    %v77 = vadd.f32 %v73, %v75
    %v78 = vmax.f32 %v76, 0.0
    %v79 = vmax.f32 %v77, 0.0
    %s80 = sld [smem:[#allocation2 + $0x11]]
    %v81 = vstv %s80
    %v82 = vmul.f32 %v78, %v81
    %v83 = vmul.f32 %v79, %v81
    %v84 = vadd.f32 %v56, %v82
    %v85 = vadd.f32 %v57, %v83
    %s86 = sld [smem:[#allocation2 + $0x6]]
    %v87 = vstv %s86
    %v88 = vmul.f32 %v24, %v87
    %v89 = vmul.f32 %v25, %v87
    %s90 = sld [smem:[#allocation2 + $0x7]]
    %v91 = vstv %s90
    %v92 = vmul.f32 %v27, %v91
    %v93 = vmul.f32 %v28, %v91
    %v94 = vadd.f32 %v88, %v92
    %v95 = vadd.f32 %v89, %v93
    %s96 = sld [smem:[#allocation2 + $0x8]]
    %v97 = vstv %s96
    %v98 = vmul.f32 %v30, %v97
    %v99 = vmul.f32 %v31, %v97
    %v100 = vadd.f32 %v94, %v98
    %v101 = vadd.f32 %v95, %v99
    %s102 = sld [smem:[#allocation2 + $0xe]]
    %v103 = vstv %s102
    %v104 = vadd.f32 %v100, %v103
    %v105 = vadd.f32 %v101, %v103
    %v106 = vmax.f32 %v104, 0.0
    %v107 = vmax.f32 %v105, 0.0
    %s108 = sld [smem:[#allocation2 + $0x12]]
    %v109 = vstv %s108
    %v110 = vmul.f32 %v106, %v109
    %v111 = vmul.f32 %v107, %v109
    %v112 = vadd.f32 %v84, %v110
    %v113 = vadd.f32 %v85, %v111
    %s114 = sld [smem:[#allocation2 + $0x9]]
    %v115 = vstv %s114
    %v116 = vmul.f32 %v24, %v115
    %v117 = vmul.f32 %v25, %v115
    %s118 = sld [smem:[#allocation2 + $0xa]]
    %v119 = vstv %s118
    %v120 = vmul.f32 %v27, %v119
    %v121 = vmul.f32 %v28, %v119
    %v122 = vadd.f32 %v116, %v120
    %v123 = vadd.f32 %v117, %v121
    %s124 = sld [smem:[#allocation2 + $0xb]]
    %v125 = vstv %s124
    %v126 = vmul.f32 %v30, %v125
    %v127 = vmul.f32 %v31, %v125
    %v128 = vadd.f32 %v122, %v126
    %v129 = vadd.f32 %v123, %v127
    %s130 = sld [smem:[#allocation2 + $0xf]]
    %v131 = vstv %s130
    %v132 = vadd.f32 %v128, %v131
    %v133 = vadd.f32 %v129, %v131
    %v134 = vmax.f32 %v132, 0.0
    %v135 = vmax.f32 %v133, 0.0
    %s136 = sld [smem:[#allocation2 + $0x13]]
    %v137 = vstv %s136
    %v138 = vmul.f32 %v134, %v137
    %v139 = vmul.f32 %v135, %v137
    %v140 = vadd.f32 %v112, %v138
    %v141 = vadd.f32 %v113, %v139
    %s142 = sld [smem:[#allocation2 + $0x14]]
    %v143 = vstv %s142
    %v144 = vadd.f32 %v140, %v143
    %v145 = vadd.f32 %v141, %v143
    %v146 = vmul.f32 %v144, 0.5
    %v147 = vmul.f32 %v145, 0.5
    %v148 = vtanh.pop %v146
    %v149 = vtanh.pop %v147
    %v150 = vadd.f32 %v148, 1.0
    %v151 = vadd.f32 %v149, 1.0
    %v152 = vmul.f32 %v150, 0.5
    %v153 = vmul.f32 %v151, 0.5
    %154 = vst [vmem:[%s2] sm:$0xff] %v152
    %155 = vst [vmem:[%s2 + $0x8] sm:$0xff] %v153
    // Predicated region
    $region14: #{simple_nn_forward.1} parent=1 // pred_check
      _
    $region15: #{simple_nn_forward.1} parent=1 // pred_check_branch
      %157 = sbr.rel (0) target = $region17
    $region16: #{simple_nn_forward.1} parent=1 // pred_region
      _
    $region17: #{simple_nn_forward.1} parent=1 // pred_fallthru
      _
    // Predicated region
    $region18: #{simple_nn_forward.1} parent=1 // pred_check
      _
    $region19: #{simple_nn_forward.1} parent=1 // pred_check_branch
      %159 = sbr.rel (0) target = $region21
    $region20: #{simple_nn_forward.1} parent=1 // pred_region
      _
    $region21: #{simple_nn_forward.1} parent=1 // pred_fallthru
      _
    %160 = vsyncpa [#allocation3], 1

</llo_original>
